<compile_context>
chip_gen: v5e
topology: v5e:2x2
jax: 0.10.0
libtpu: 0.0.40
codegen_flags: <defaults>
</compile_context>

<pallas_src>
import functools

import numpy as np
import jax
import jax.numpy as jnp
from jax import lax
from jax.experimental import pallas as pl
from jax.experimental.pallas import tpu as pltpu

PSEE_ANCHORS = [(1.0 / 3, 1), (0.5, 1), (1, 1), (1, 1.5), (2, 1), (3, 1)]


def generate_anchors(box_size, ratio_scale_list):
    """Deterministic parameter setup (mirrors AnchorLayer.generate_anchors)."""
    anchors = np.zeros((len(ratio_scale_list), 2), dtype=np.float32)
    for i, (ratio, scale) in enumerate(ratio_scale_list):
        anchors[i, 0] = scale * box_size * np.sqrt(ratio)   # width
        anchors[i, 1] = scale * box_size / np.sqrt(ratio)   # height
    return jnp.asarray(anchors, dtype=jnp.float32)


def _build_row_template(width, stride, box_sizes_np):
    """Precompute the per-row constant part of the anchor grid.

    Returns:
      template (1, W*A*4): [x, 0, w_a, h_a] pattern with x centers baked in.
      y_mask   (1, W*A*4): 1.0 at y-component positions, 0.0 elsewhere.
    Row-major layout matches torch's (W, A, 4) inner ordering.
    """
    A = box_sizes_np.shape[0]
    xs = (np.arange(width, dtype=np.float32) + 0.5) * float(stride)
    tmpl = np.zeros((width, A, 4), dtype=np.float32)
    tmpl[:, :, 0] = xs[:, None]                       # x center (varies over W)
    tmpl[:, :, 2] = box_sizes_np[None, :, 0]          # box width per anchor
    tmpl[:, :, 3] = box_sizes_np[None, :, 1]          # box height per anchor
    ymask = np.zeros((width, A, 4), dtype=np.float32)
    ymask[:, :, 1] = 1.0                              # y center slot
    return (jnp.asarray(tmpl.reshape(1, -1)),
            jnp.asarray(ymask.reshape(1, -1)))


def _pick_tile_h(height, lane_width):
    """Choose a row-tile size: multiple of 8, ~<=512 KiB per block."""
    target_bytes = 512 * 1024
    tile_h = max(8, (target_bytes // (lane_width * 4)) // 8 * 8)
    if tile_h >= height:
        return height                                 # single full-height block
    return tile_h


def _anchor_kernel(tmpl_ref, ymask_ref, out_ref, *, stride):
    # out_ref: (tile_h, W*A*4).  Only the y coordinate varies across rows:
    #   y = (global_row + 0.5) * stride
    tile_h = out_ref.shape[0]
    row0 = pl.program_id(0) * tile_h
    iy = lax.broadcasted_iota(jnp.int32, (tile_h, 1), 0) + row0
    y = (iy.astype(jnp.float32) + 0.5) * jnp.float32(stride)
    # Single broadcast FMA: constant row template + per-row y in the y slots.
    out_ref[...] = tmpl_ref[...] + y * ymask_ref[...]


def anchor_layer_forward(height: int, width: int, stride: int, box_sizes,
                         tile_h=None):
    """Pallas equivalent of AnchorLayer.forward(shape, stride) -> (H*W*A, 4)."""
    A = int(box_sizes.shape[0])
    lane_width = width * A * 4
    tmpl, ymask = _build_row_template(width, stride, np.asarray(box_sizes))

    if tile_h is None:
        tile_h = _pick_tile_h(height, lane_width)
    grid = (pl.cdiv(height, tile_h),)

    out = pl.pallas_call(
        functools.partial(_anchor_kernel, stride=float(stride)),
        out_shape=jax.ShapeDtypeStruct((height, lane_width), jnp.float32),
        grid_spec=pltpu.PrefetchScalarGridSpec(
            num_scalar_prefetch=0,
            grid=grid,
            in_specs=[
                pl.BlockSpec((1, lane_width), lambda i: (0, 0)),  # template
                pl.BlockSpec((1, lane_width), lambda i: (0, 0)),  # y mask
            ],
            out_specs=pl.BlockSpec((tile_h, lane_width), lambda i: (i, 0)),
        ),
        compiler_params=pltpu.CompilerParams(
            dimension_semantics=("parallel",)),
        cost_estimate=pl.CostEstimate(
            flops=2 * height * lane_width,
            transcendentals=0,
            bytes_accessed=height * lane_width * 4),
    )(tmpl, ymask)
    return out.reshape(-1, 4)


def _numpy_reference(height, width, stride, box_sizes_np):
    A = box_sizes_np.shape[0]
    ys = (np.arange(height, dtype=np.float32) + 0.5) * stride
    xs = (np.arange(width, dtype=np.float32) + 0.5) * stride
    ref = np.zeros((height, width, A, 4), dtype=np.float32)
    ref[..., 0] = xs[None, :, None]
    ref[..., 1] = ys[:, None, None]
    ref[..., 2] = box_sizes_np[None, None, :, 0]
    ref[..., 3] = box_sizes_np[None, None, :, 1]
    return ref.reshape(-1, 4)


if __name__ == "__main__":
    # Small deterministic example: an NCHW feature map whose spatial shape
    # drives the anchor grid (as in the PyTorch usage: layer(x.shape, stride)).
    key = jax.random.PRNGKey(0)
    fmap = jax.random.normal(key, (2, 4, 16, 16), dtype=jnp.float32)  # NCHW
    H, W = int(fmap.shape[-2]), int(fmap.shape[-1])
    stride = 8
    box_size = 32
    box_sizes = generate_anchors(box_size, PSEE_ANCHORS)
    box_sizes_np = np.asarray(box_sizes)
    A = box_sizes_np.shape[0]

    # Case 1: default tiling (single full-height block at this small size).
    anchors = anchor_layer_forward(H, W, stride, box_sizes)
    anchors = jax.block_until_ready(anchors)
    assert anchors.shape == (H * W * A, 4) and anchors.dtype == jnp.float32
    np.testing.assert_allclose(np.asarray(anchors),
                               _numpy_reference(H, W, stride, box_sizes_np),
                               rtol=1e-6, atol=1e-5)

    # Case 2: force a small row tile so the grid has several steps and a
    # partial last block (H2 not a multiple of tile_h) to exercise the pipeline.
    H2, W2, stride2 = 20, 12, 16
    anchors2 = anchor_layer_forward(H2, W2, stride2, box_sizes, tile_h=8)
    anchors2 = jax.block_until_ready(anchors2)
    assert anchors2.shape == (H2 * W2 * A, 4)
    np.testing.assert_allclose(np.asarray(anchors2),
                               _numpy_reference(H2, W2, stride2, box_sizes_np),
                               rtol=1e-6, atol=1e-5)

    print("KERNEL_OK")
</pallas_src>

<mosaic_0001>
module attributes {stable_mosaic.version = 11 : i64} {
  func.func @_anchor_kernel(%arg0: i32, %arg1: memref<1x384xf32, #tpu.memory_space<vmem>>, %arg2: memref<1x384xf32, #tpu.memory_space<vmem>>, %arg3: memref<16x384xf32, #tpu.memory_space<vmem>>) attributes {dimension_semantics = [#tpu.dimension_semantics<parallel>], iteration_bounds = array<i64: 1>, scalar_prefetch = 0 : i64, scratch_operands = 0 : i64, tpu.core_type = #tpu.core_type<tc>, window_params = [{pipeline_mode = #tpu.pipeline_mode<synchronous>, transform_indices = @transform_0, window_bounds = array<i64: 1, 384>}, {pipeline_mode = #tpu.pipeline_mode<synchronous>, transform_indices = @transform_1, window_bounds = array<i64: 1, 384>}, {transform_indices = @transform_2, window_bounds = array<i64: 16, 384>}]} {
    %c16_i32 = arith.constant 16 : i32
    %0 = arith.muli %arg0, %c16_i32 : i32
    %1 = tpu.iota {dimensions = array<i32: 0>} : vector<16x1xi32>
    %2 = vector.broadcast %0 : i32 to vector<16x1xi32>
    %3 = arith.addi %1, %2 : vector<16x1xi32>
    %4 = arith.sitofp %3 : vector<16x1xi32> to vector<16x1xf32>
    %cst = arith.constant 5.000000e-01 : f32
    %5 = vector.broadcast %cst : f32 to vector<16x1xf32>
    %6 = arith.addf %4, %5 : vector<16x1xf32>
    %cst_0 = arith.constant 8.000000e+00 : f32
    %7 = vector.broadcast %cst_0 : f32 to vector<16x1xf32>
    %8 = arith.mulf %6, %7 : vector<16x1xf32>
    %c0 = arith.constant 0 : index
    %c0_1 = arith.constant 0 : index
    %9 = vector.load %arg1[%c0, %c0_1] : memref<1x384xf32, #tpu.memory_space<vmem>>, vector<1x384xf32>
    %c0_2 = arith.constant 0 : index
    %c0_3 = arith.constant 0 : index
    %10 = vector.load %arg2[%c0_2, %c0_3] : memref<1x384xf32, #tpu.memory_space<vmem>>, vector<1x384xf32>
    %11 = vector.broadcast %8 : vector<16x1xf32> to vector<16x384xf32>
    %12 = vector.broadcast %10 : vector<1x384xf32> to vector<16x384xf32>
    %13 = arith.mulf %11, %12 : vector<16x384xf32>
    %14 = vector.broadcast %9 : vector<1x384xf32> to vector<16x384xf32>
    %15 = arith.addf %14, %13 : vector<16x384xf32>
    %c0_4 = arith.constant 0 : index
    %c0_5 = arith.constant 0 : index
    %16 = vector.load %arg3[%c0_4, %c0_5] : memref<16x384xf32, #tpu.memory_space<vmem>>, vector<16x384xf32>
    tpu.vector_store %arg3[%c0_4, %c0_5], %15 {strides = array<i32>} : memref<16x384xf32, #tpu.memory_space<vmem>>, vector<16x384xf32>,
    return
  }
  func.func @transform_0(%arg0: i32) -> (i32, i32) {
    %c0_i32 = arith.constant 0 : i32
    %c0_i32_0 = arith.constant 0 : i32
    %c0_i32_1 = arith.constant 0 : i32
    return %c0_i32, %c0_i32_0 : i32, i32
  }
  func.func @transform_1(%arg0: i32) -> (i32, i32) {
    %c0_i32 = arith.constant 0 : i32
    %c0_i32_0 = arith.constant 0 : i32
    %c0_i32_1 = arith.constant 0 : i32
    return %c0_i32, %c0_i32_0 : i32, i32
  }
  func.func @transform_2(%arg0: i32) -> (i32, i32) {
    %c0_i32 = arith.constant 0 : i32
    %c0_i32_0 = arith.constant 0 : i32
    return %arg0, %c0_i32 : i32, i32
  }
}

</mosaic_0001>

<llo_original>
// kernel: tpu_custom_call.1
$region0: #{tpu_custom_call.1}
  #allocation0 [shape = 'u32[]', space=smem, size = 0x4, offset = 0x4, fixed_abs, tag = 'smem constant byte address 0x4 - core index']
  #allocation1 [shape = 'u32[72,128]{1,0:T(1,128)}', space=vmem, size = 0x9000, scoped, tag = 'internal scratch']
  %s0 = inlined_call_operand.hbm [shape: f32[1,384], index: 0, kind: input, shape index: {}]
  %s1 = inlined_call_operand.hbm [shape: f32[1,384], index: 1, kind: input, shape index: {}]
  %s2 = inlined_call_operand.hbm [shape: f32[16,384], index: 2, kind: output, shape index: {}]
  %s3 = sld [smem:[#allocation0]]
  $region26: #{tpu_custom_call.1} parent=0
    _
  %s5 = ssub.s32 1, %s3
  %s6 = scalar_select 0, %s5, %s3
  $region1: #{tpu_custom_call.1} parent=0
    #allocation2 [shape = 'u8[1536]{0}', space=vmem, size = 0x800, scoped, tag = 'input window, operand 0, single buffered']
    #allocation3 [shape = 's32[1]{0}', space=sflag, size = 0x4, scoped, tag = 'scoped memory for tpu_custom_call.1']
    #allocation4 [shape = 's32[1]{0}', space=sflag, size = 0x4, scoped, tag = 'scoped memory for tpu_custom_call.1']
    #allocation5 [shape = 'u8[1536]{0}', space=vmem, size = 0x800, scoped, tag = 'input window, operand 1, single buffered']
    #allocation6 [shape = 's32[1]{0}', space=sflag, size = 0x4, scoped, tag = 'scoped memory for tpu_custom_call.1']
    #allocation7 [shape = 'u8[24576]{0}', space=vmem, size = 0x6000, scoped, tag = 'output window, operand 0, single buffered']
    %7 = vsyncpa [#allocation3], 0
    %8 = vsyncpa [#allocation6], 0
    %9 = vsyncpa [#allocation4], 0
    // Predicated region
    $region2: #{tpu_custom_call.1} parent=1 // pred_check
      _
    $region3: #{tpu_custom_call.1} parent=1 // pred_check_branch
      %11 = sbr.rel (0) target = $region5
    $region4: #{tpu_custom_call.1} parent=1 // pred_region
      %13 = vsyncadd [#allocation3], 0
      %s15 = sshll.u32 %s0, 4
      %s16 = int_to_ptr.hbm [resolvable:$true] %s15
      %s17 = sshll.u32 [#allocation2], 4
      %s18 = int_to_ptr.vmem [resolvable:$true] %s17
      %20 = dma.hbm_to_vmem [thread:$0]  %s16, 48, %s18, [#allocation3]
    $region5: #{tpu_custom_call.1} parent=1 // pred_fallthru
      _
    // Predicated region
    $region6: #{tpu_custom_call.1} parent=1 // pred_check
      _
    $region7: #{tpu_custom_call.1} parent=1 // pred_check_branch
      %22 = sbr.rel (0) target = $region9
    $region8: #{tpu_custom_call.1} parent=1 // pred_region
      %24 = vsyncadd [#allocation6], 0
      %s26 = sshll.u32 %s1, 4
      %s27 = int_to_ptr.hbm [resolvable:$true] %s26
      %s28 = sshll.u32 [#allocation5], 4
      %s29 = int_to_ptr.vmem [resolvable:$true] %s28
      %31 = dma.hbm_to_vmem [thread:$0]  %s27, 48, %s29, [#allocation6]
    $region9: #{tpu_custom_call.1} parent=1 // pred_fallthru
      _
    // Predicated region
    $region10: #{tpu_custom_call.1} parent=1 // pred_check
      _
    $region11: #{tpu_custom_call.1} parent=1 // pred_check_branch
      %33 = sbr.rel (0) target = $region13
    $region12: #{tpu_custom_call.1} parent=1 // pred_region
      %35 = dma.done [#allocation3], 48
    $region13: #{tpu_custom_call.1} parent=1 // pred_fallthru
      _
    // Predicated region
    $region14: #{tpu_custom_call.1} parent=1 // pred_check
      _
    $region15: #{tpu_custom_call.1} parent=1 // pred_check_branch
      %37 = sbr.rel (0) target = $region17
    $region16: #{tpu_custom_call.1} parent=1 // pred_region
      %39 = dma.done [#allocation6], 48
    $region17: #{tpu_custom_call.1} parent=1 // pred_fallthru
      _
    %s40 = smul.u32 0, 16
    %v41 = vlaneseq
    %v42 = vshrl.u32 %v41, 7
    %v43 = vadd.s32 %v42, 8
    %v44 = vstv %s40
    %v45 = vadd.s32 %v42, %v44
    %v46 = vadd.s32 %v43, %v44
    %v47 = vcvt.s32.f32 %v45
    %v48 = vcvt.s32.f32 %v46
    %v49 = vadd.f32 %v47, 0.5
    %v50 = vadd.f32 %v48, 0.5
    %v51 = vmul.f32 %v49, 8.0
    %v52 = vmul.f32 %v50, 8.0
    %v53 = vld [vmem:[#allocation2] sm:$0x7]
    %v54 = vld [vmem:[#allocation5] sm:$0x7]
    %v56 = vperm.slane %v54, 0
    %v57 = vperm.slane %v54, 1
    %v58 = vperm.slane %v54, 2
    %v62 = vmul.f32 %v51, %v56
    %v63 = vmul.f32 %v51, %v57
    %v64 = vmul.f32 %v51, %v58
    %v65 = vmul.f32 %v52, %v56
    %v66 = vmul.f32 %v52, %v57
    %v67 = vmul.f32 %v52, %v58
    %v69 = vperm.slane %v53, 0
    %v70 = vperm.slane %v53, 1
    %v71 = vperm.slane %v53, 2
    %v75 = vadd.f32 %v69, %v62
    %v76 = vadd.f32 %v70, %v63
    %v77 = vadd.f32 %v71, %v64
    %v78 = vadd.f32 %v69, %v65
    %v79 = vadd.f32 %v70, %v66
    %v80 = vadd.f32 %v71, %v67
    %81 = vst [vmem:[#allocation7] sm:$0xff] %v75
    %82 = vst [vmem:[#allocation7 + $0x8] sm:$0xff] %v76
    %83 = vst [vmem:[#allocation7 + $0x10] sm:$0xff] %v77
    %84 = vst [vmem:[#allocation7 + $0x18] sm:$0xff] %v78
    %85 = vst [vmem:[#allocation7 + $0x20] sm:$0xff] %v79
    %86 = vst [vmem:[#allocation7 + $0x28] sm:$0xff] %v80
    // Predicated region
    $region18: #{tpu_custom_call.1} parent=1 // pred_check
      _
    $region19: #{tpu_custom_call.1} parent=1 // pred_check_branch
      %88 = sbr.rel (0) target = $region21
    $region20: #{tpu_custom_call.1} parent=1 // pred_region
      %90 = vsyncadd [#allocation4], 0
      %s91 = sshll.u32 [#allocation7], 4
      %s92 = int_to_ptr.vmem [resolvable:$true] %s91
      %s93 = sshll.u32 %s2, 4
      %s94 = int_to_ptr.hbm [resolvable:$true] %s93
      %99 = dma.vmem_to_hbm [thread:$0]  %s92, 768, %s94, [#allocation4], 384, 384, 24
    $region21: #{tpu_custom_call.1} parent=1 // pred_fallthru
      _
    // Predicated region
    $region22: #{tpu_custom_call.1} parent=1 // pred_check
      _
    $region23: #{tpu_custom_call.1} parent=1 // pred_check_branch
      %101 = sbr.rel (0) target = $region25
    $region24: #{tpu_custom_call.1} parent=1 // pred_region
      %103 = dma.done [#allocation4], 768
    $region25: #{tpu_custom_call.1} parent=1 // pred_fallthru
      _
    %104 = vsyncpa [#allocation3], 1
    %105 = vsyncpa [#allocation6], 1
    %106 = vsyncpa [#allocation4], 1

</llo_original>
